<compile_context>
chip_gen: v5e
topology: v5e:2x2
jax: 0.10.0
libtpu: 0.0.40
codegen_flags: <defaults>
</compile_context>

<pallas_src>
import jax
import jax.numpy as jnp
import numpy as np
from jax.experimental import pallas as pl
from jax.experimental.pallas import tpu as pltpu

# ---- configuration (small shapes consistent with the module) ----
B, S, D, H = 2, 8, 64, 8          # batch, seq, input_dims, num_heads
HD = D // H                        # head_dims
FF = 4 * D                         # fwd_expand * input_dims
BS = B * S                         # batch folded into the sublane (row) axis
EPS = 1e-5                         # nn.LayerNorm default eps

# MXU operand dtype (review item for v6e/v7x). Softmax / LayerNorm stay in f32
# (v5e has no bf16 VPU/EUP, but its MXU still benefits from bf16 operands).
MXU_DTYPE = jnp.bfloat16


def _layer_norm(x, gamma, beta):
    mu = jnp.mean(x, axis=-1, keepdims=True)
    xc = x - mu
    var = jnp.mean(xc * xc, axis=-1, keepdims=True)
    return xc * jax.lax.rsqrt(var + EPS) * gamma + beta


def encoder_block_kernel(v_ref, k_ref, q_ref,
                         wv_ref, wk_ref, wq_ref,
                         wo_ref, bo_ref,
                         g1_ref, be1_ref,
                         w1_ref, b1_ref,
                         w2_ref, b2_ref,
                         g2_ref, be2_ref,
                         hmask_ref,
                         o_ref):
    f32 = jnp.float32

    # Single grid step: every ref is read exactly once.
    v = v_ref[...]                     # (BS, D) f32
    k = k_ref[...]
    q = q_ref[...]                     # kept in f32 for the residual
    hmask = hmask_ref[...]             # (H*S, D) f32 {0,1}; row h*S+t keeps head-h lanes
    hmask_mxu = hmask.astype(MXU_DTYPE)

    # ---- QKV projections: (BS, D) @ (D, D) block-diagonal weights (bf16 MXU, f32 acc) ----
    vh = jnp.dot(v.astype(MXU_DTYPE), wv_ref[...], preferred_element_type=f32)
    kh = jnp.dot(k.astype(MXU_DTYPE), wk_ref[...], preferred_element_type=f32)
    qh = jnp.dot(q.astype(MXU_DTYPE), wq_ref[...], preferred_element_type=f32)  # 1/8 folded in

    # ---- lane-packed multi-head attention; one static iteration per batch element ----
    ctx_parts = []
    for b in range(B):
        rows = slice(b * S, (b + 1) * S)            # sublane-aligned static slice
        qb = qh[rows, :].astype(MXU_DTYPE)          # (S, D)
        kb = kh[rows, :]                            # (S, D) f32
        vb = vh[rows, :]
        # Block-diagonal K / V slabs: row h*S+t holds key/value t with only head h's
        # lanes kept, so all H heads are handled by full-lane matmuls (no per-head loop).
        kbd = (jnp.concatenate([kb] * H, axis=0) * hmask).astype(MXU_DTYPE)   # (H*S, D)
        vbd = (jnp.concatenate([vb] * H, axis=0) * hmask).astype(MXU_DTYPE)   # (H*S, D)
        # scores[s, h*S + t] = <q_h[s], k_h[t]>  (contract last dims -> no transpose)
        scores = jax.lax.dot_general(qb, kbd, (((1,), (1,)), ((), ())),
                                     preferred_element_type=f32)              # (S, H*S)
        # Per-row GLOBAL max is valid: constant along every head's key axis.
        scores = scores - jnp.max(scores, axis=-1, keepdims=True)
        p = jnp.exp(scores)                          # ONE EUP exp for all heads
        p_mxu = p.astype(MXU_DTYPE)
        # Unnormalized context + per-head denominators broadcast to each head's lanes.
        ctx = jnp.dot(p_mxu, vbd, preferred_element_type=f32)                 # (S, D)
        den = jnp.dot(p_mxu, hmask_mxu, preferred_element_type=f32)           # (S, D)
        ctx_parts.append(ctx * pl.reciprocal(den, approx=True))
    attn = jnp.concatenate(ctx_parts, axis=0)        # (BS, D)

    # ---- attention output projection (with bias) ----
    a = jnp.dot(attn.astype(MXU_DTYPE), wo_ref[...], preferred_element_type=f32) + bo_ref[...]

    # ---- residual + LayerNorm1 (dropout_prob = 0.0 -> identity) ----
    x = _layer_norm(a + q, g1_ref[...], be1_ref[...])

    # ---- feed forward: Linear -> ReLU -> Linear ----
    h1 = jnp.dot(x.astype(MXU_DTYPE), w1_ref[...], preferred_element_type=f32) + b1_ref[...]
    h1 = jnp.maximum(h1, 0.0)
    f = jnp.dot(h1.astype(MXU_DTYPE), w2_ref[...], preferred_element_type=f32) + b2_ref[...]

    # ---- out = LayerNorm2(f) + f  (residual is f, exactly as the module forward) ----
    # TODO(synk): D=64 < 128 leaves this single store lane-masked; a lane-dense repack to
    # (B*S*D/128, 128) needs a segmented LayerNorm and is a negligible win at these shapes.
    o_ref[...] = _layer_norm(f, g2_ref[...], be2_ref[...]) + f


@jax.jit
def encoder_block(v, k, q, params):
    f32 = jnp.float32
    # Block-diagonal per-head projection weights (same (HD,HD) weight shared by all heads,
    # as in the module). Fold the 1/sqrt(input_dims) = 1/8 scale into Wq (power of two ->
    # exact even after the bf16 cast).
    eye_h = jnp.eye(H, dtype=f32)
    wv_bd = jnp.kron(eye_h, params['wv']).astype(MXU_DTYPE)
    wk_bd = jnp.kron(eye_h, params['wk']).astype(MXU_DTYPE)
    wq_bd = (jnp.kron(eye_h, params['wq']) * (1.0 / (D ** 0.5))).astype(MXU_DTYPE)

    # Constant packed-head mask: hmask[h*S + t, c] = 1 iff lane c belongs to head h.
    row_head = jnp.repeat(jnp.arange(H), S)          # (H*S,)
    col_head = jnp.repeat(jnp.arange(H), HD)         # (D,)
    hmask = (row_head[:, None] == col_head[None, :]).astype(f32)

    # Fold batch into the sublane axis: one (B*S, D) slab, single grid step.
    v2 = v.reshape(BS, D)
    k2 = k.reshape(BS, D)
    q2 = q.reshape(BS, D)

    def full(shape):
        n = len(shape)
        return pl.BlockSpec(shape, lambda i, _n=n: (0,) * _n)

    in_specs = [
        full((BS, D)), full((BS, D)), full((BS, D)),      # v, k, q
        full((D, D)), full((D, D)), full((D, D)),         # block-diag wv, wk, wq (bf16)
        full((D, D)), full((1, D)),                       # wo (bf16), bo
        full((1, D)), full((1, D)),                       # gamma1, beta1
        full((D, FF)), full((1, FF)),                     # w1 (bf16), b1
        full((FF, D)), full((1, D)),                      # w2 (bf16), b2
        full((1, D)), full((1, D)),                       # gamma2, beta2
        full((H * S, D)),                                 # packed-head mask
    ]

    # Single grid step (batch lives in the sublane axis).
    # TODO(synk): on v7x, a CORE_PARALLEL batch axis (grid=(B,)) may win once per-core
    # work is large; at these shapes the collapsed single step is faster. When scaling
    # D/FF up, add an "arbitrary" FF-axis grid dim and set vmem_limit_bytes so the
    # whole-weight-resident layout fits v7x's 64 MiB VMEM.
    out2 = pl.pallas_call(
        encoder_block_kernel,
        out_shape=jax.ShapeDtypeStruct((BS, D), f32),
        grid=(1,),
        in_specs=in_specs,
        out_specs=full((BS, D)),
        compiler_params=pltpu.CompilerParams(dimension_semantics=("arbitrary",)),
    )(v2, k2, q2,
      wv_bd, wk_bd, wq_bd,
      params['wo'].astype(MXU_DTYPE), params['bo'],
      params['g1'], params['be1'],
      params['w1'].astype(MXU_DTYPE), params['b1'],
      params['w2'].astype(MXU_DTYPE), params['b2'],
      params['g2'], params['be2'],
      hmask)
    return out2.reshape(B, S, D)


def reference(v, k, q, params):
    """Pure-JAX f32 reference mirroring the PyTorch forward exactly."""
    vr = v.reshape(B, S, H, HD) @ params['wv']
    kr = k.reshape(B, S, H, HD) @ params['wk']
    qr = q.reshape(B, S, H, HD) @ params['wq']
    qk = jnp.einsum('bqhd,bkhd->bhqk', qr, kr)
    attnw = jax.nn.softmax(qk / (D ** 0.5), axis=3)
    av = jnp.einsum('bhql,blhd->bqhd', attnw, vr).reshape(B, S, D)
    a = av @ params['wo'] + params['bo']
    x = _layer_norm(a + q, params['g1'], params['be1'])
    hdn = jax.nn.relu(x @ params['w1'] + params['b1'])
    f = hdn @ params['w2'] + params['b2']
    return _layer_norm(f, params['g2'], params['be2']) + f


if __name__ == "__main__":
    key = jax.random.PRNGKey(0)
    keys = jax.random.split(key, 16)

    def rnd(kk, shape, scale):
        return jax.random.normal(kk, shape, dtype=jnp.float32) * scale

    # Deterministic synthetic parameters (shapes from the module __init__).
    params = {
        'wv': rnd(keys[0], (HD, HD), 0.2),
        'wk': rnd(keys[1], (HD, HD), 0.2),
        'wq': rnd(keys[2], (HD, HD), 0.2),
        'wo': rnd(keys[3], (D, D), 0.05),
        'bo': rnd(keys[4], (1, D), 0.05),
        'g1': jnp.ones((1, D), jnp.float32) + rnd(keys[5], (1, D), 0.05),
        'be1': rnd(keys[6], (1, D), 0.05),
        'w1': rnd(keys[7], (D, FF), 0.05),
        'b1': rnd(keys[8], (1, FF), 0.05),
        'w2': rnd(keys[9], (FF, D), 0.05),
        'b2': rnd(keys[10], (1, D), 0.05),
        'g2': jnp.ones((1, D), jnp.float32) + rnd(keys[11], (1, D), 0.05),
        'be2': rnd(keys[12], (1, D), 0.05),
    }

    inp_value = jax.random.normal(keys[13], (B, S, D), jnp.float32)
    inp_key   = jax.random.normal(keys[14], (B, S, D), jnp.float32)
    inp_query = jax.random.normal(keys[15], (B, S, D), jnp.float32)

    out = jax.block_until_ready(encoder_block(inp_value, inp_key, inp_query, params))
    ref = reference(inp_value, inp_key, inp_query, params)
    assert out.shape == (B, S, D)

    # Tolerance: with MXU_DTYPE = bfloat16 (review item for v6e/v7x), matmul-operand
    # rounding (plus the EUP approx reciprocal in softmax) dominates the deviation from
    # the f32 PyTorch-faithful reference (observed ~1e-2 worst element, amplified mostly
    # by LayerNorm2). With MXU_DTYPE = float32 the kernel matches to ~2e-3.
    tol = 5e-2 if MXU_DTYPE == jnp.bfloat16 else 2e-3
    np.testing.assert_allclose(np.asarray(out), np.asarray(ref), rtol=tol, atol=tol)

    # TODO(synk): mask handling and non-zero dropout are not exercised (mask=None,
    # dropout_prob=0.0 in the reference module), so they are omitted here.
    print("KERNEL_OK")
</pallas_src>

<mosaic_0001>
module attributes {stable_mosaic.version = 11 : i64} {
  func.func @encoder_block_kernel(%arg0: i32, %arg1: memref<16x64xf32, #tpu.memory_space<vmem>>, %arg2: memref<16x64xf32, #tpu.memory_space<vmem>>, %arg3: memref<16x64xf32, #tpu.memory_space<vmem>>, %arg4: memref<64x64xbf16, #tpu.memory_space<vmem>>, %arg5: memref<64x64xbf16, #tpu.memory_space<vmem>>, %arg6: memref<64x64xbf16, #tpu.memory_space<vmem>>, %arg7: memref<64x64xbf16, #tpu.memory_space<vmem>>, %arg8: memref<1x64xf32, #tpu.memory_space<vmem>>, %arg9: memref<1x64xf32, #tpu.memory_space<vmem>>, %arg10: memref<1x64xf32, #tpu.memory_space<vmem>>, %arg11: memref<64x256xbf16, #tpu.memory_space<vmem>>, %arg12: memref<1x256xf32, #tpu.memory_space<vmem>>, %arg13: memref<256x64xbf16, #tpu.memory_space<vmem>>, %arg14: memref<1x64xf32, #tpu.memory_space<vmem>>, %arg15: memref<1x64xf32, #tpu.memory_space<vmem>>, %arg16: memref<1x64xf32, #tpu.memory_space<vmem>>, %arg17: memref<64x64xf32, #tpu.memory_space<vmem>>, %arg18: memref<16x64xf32, #tpu.memory_space<vmem>>) attributes {dimension_semantics = [#tpu.dimension_semantics<arbitrary>], iteration_bounds = array<i64: 1>, scalar_prefetch = 0 : i64, scratch_operands = 0 : i64, tpu.core_type = #tpu.core_type<tc>, window_params = [{pipeline_mode = #tpu.pipeline_mode<synchronous>, transform_indices = @transform_0, window_bounds = array<i64: 16, 64>}, {pipeline_mode = #tpu.pipeline_mode<synchronous>, transform_indices = @transform_1, window_bounds = array<i64: 16, 64>}, {pipeline_mode = #tpu.pipeline_mode<synchronous>, transform_indices = @transform_2, window_bounds = array<i64: 16, 64>}, {pipeline_mode = #tpu.pipeline_mode<synchronous>, transform_indices = @transform_3, window_bounds = array<i64: 64, 64>}, {pipeline_mode = #tpu.pipeline_mode<synchronous>, transform_indices = @transform_4, window_bounds = array<i64: 64, 64>}, {pipeline_mode = #tpu.pipeline_mode<synchronous>, transform_indices = @transform_5, window_bounds = array<i64: 64, 64>}, {pipeline_mode = #tpu.pipeline_mode<synchronous>, transform_indices = @transform_6, window_bounds = array<i64: 64, 64>}, {pipeline_mode = #tpu.pipeline_mode<synchronous>, transform_indices = @transform_7, window_bounds = array<i64: 1, 64>}, {pipeline_mode = #tpu.pipeline_mode<synchronous>, transform_indices = @transform_8, window_bounds = array<i64: 1, 64>}, {pipeline_mode = #tpu.pipeline_mode<synchronous>, transform_indices = @transform_9, window_bounds = array<i64: 1, 64>}, {pipeline_mode = #tpu.pipeline_mode<synchronous>, transform_indices = @transform_10, window_bounds = array<i64: 64, 256>}, {pipeline_mode = #tpu.pipeline_mode<synchronous>, transform_indices = @transform_11, window_bounds = array<i64: 1, 256>}, {pipeline_mode = #tpu.pipeline_mode<synchronous>, transform_indices = @transform_12, window_bounds = array<i64: 256, 64>}, {pipeline_mode = #tpu.pipeline_mode<synchronous>, transform_indices = @transform_13, window_bounds = array<i64: 1, 64>}, {pipeline_mode = #tpu.pipeline_mode<synchronous>, transform_indices = @transform_14, window_bounds = array<i64: 1, 64>}, {pipeline_mode = #tpu.pipeline_mode<synchronous>, transform_indices = @transform_15, window_bounds = array<i64: 1, 64>}, {pipeline_mode = #tpu.pipeline_mode<synchronous>, transform_indices = @transform_16, window_bounds = array<i64: 64, 64>}, {pipeline_mode = #tpu.pipeline_mode<synchronous>, transform_indices = @transform_17, window_bounds = array<i64: 16, 64>}]} {
    %c0 = arith.constant 0 : index
    %c0_0 = arith.constant 0 : index
    %0 = vector.load %arg1[%c0, %c0_0] : memref<16x64xf32, #tpu.memory_space<vmem>>, vector<16x64xf32>
    %c0_1 = arith.constant 0 : index
    %c0_2 = arith.constant 0 : index
    %1 = vector.load %arg2[%c0_1, %c0_2] : memref<16x64xf32, #tpu.memory_space<vmem>>, vector<16x64xf32>
    %c0_3 = arith.constant 0 : index
    %c0_4 = arith.constant 0 : index
    %2 = vector.load %arg3[%c0_3, %c0_4] : memref<16x64xf32, #tpu.memory_space<vmem>>, vector<16x64xf32>
    %c0_5 = arith.constant 0 : index
    %c0_6 = arith.constant 0 : index
    %3 = vector.load %arg17[%c0_5, %c0_6] : memref<64x64xf32, #tpu.memory_space<vmem>>, vector<64x64xf32>
    %4 = arith.truncf %3 : vector<64x64xf32> to vector<64x64xbf16>
    %5 = arith.truncf %0 : vector<16x64xf32> to vector<16x64xbf16>
    %c0_7 = arith.constant 0 : index
    %c0_8 = arith.constant 0 : index
    %6 = vector.load %arg4[%c0_7, %c0_8] : memref<64x64xbf16, #tpu.memory_space<vmem>>, vector<64x64xbf16>
    %cst = arith.constant dense<0.000000e+00> : vector<16x64xf32>
    %7 = tpu.matmul %5, %6, %cst {dimension_numbers = #tpu.dot_dimension_numbers<[1], [0], [0], [1], [0, 0, 1, 1], [], []>} : vector<16x64xbf16>, vector<64x64xbf16>, vector<16x64xf32> -> vector<16x64xf32>
    %8 = arith.truncf %1 : vector<16x64xf32> to vector<16x64xbf16>
    %c0_9 = arith.constant 0 : index
    %c0_10 = arith.constant 0 : index
    %9 = vector.load %arg5[%c0_9, %c0_10] : memref<64x64xbf16, #tpu.memory_space<vmem>>, vector<64x64xbf16>
    %cst_11 = arith.constant dense<0.000000e+00> : vector<16x64xf32>
    %10 = tpu.matmul %8, %9, %cst_11 {dimension_numbers = #tpu.dot_dimension_numbers<[1], [0], [0], [1], [0, 0, 1, 1], [], []>} : vector<16x64xbf16>, vector<64x64xbf16>, vector<16x64xf32> -> vector<16x64xf32>
    %11 = arith.truncf %2 : vector<16x64xf32> to vector<16x64xbf16>
    %c0_12 = arith.constant 0 : index
    %c0_13 = arith.constant 0 : index
    %12 = vector.load %arg6[%c0_12, %c0_13] : memref<64x64xbf16, #tpu.memory_space<vmem>>, vector<64x64xbf16>
    %cst_14 = arith.constant dense<0.000000e+00> : vector<16x64xf32>
    %13 = tpu.matmul %11, %12, %cst_14 {dimension_numbers = #tpu.dot_dimension_numbers<[1], [0], [0], [1], [0, 0, 1, 1], [], []>} : vector<16x64xbf16>, vector<64x64xbf16>, vector<16x64xf32> -> vector<16x64xf32>
    %14 = vector.extract_strided_slice %13 {offsets = [0, 0], sizes = [8, 64], strides = [1, 1]} : vector<16x64xf32> to vector<8x64xf32>
    %15 = arith.truncf %14 : vector<8x64xf32> to vector<8x64xbf16>
    %16 = vector.extract_strided_slice %10 {offsets = [0, 0], sizes = [8, 64], strides = [1, 1]} : vector<16x64xf32> to vector<8x64xf32>
    %17 = vector.extract_strided_slice %7 {offsets = [0, 0], sizes = [8, 64], strides = [1, 1]} : vector<16x64xf32> to vector<8x64xf32>
    %18 = tpu.concatenate %16, %16, %16, %16, %16, %16, %16, %16 in 0 : vector<8x64xf32>, vector<8x64xf32>, vector<8x64xf32>, vector<8x64xf32>, vector<8x64xf32>, vector<8x64xf32>, vector<8x64xf32>, vector<8x64xf32> -> vector<64x64xf32>
    %19 = arith.mulf %18, %3 : vector<64x64xf32>
    %20 = arith.truncf %19 : vector<64x64xf32> to vector<64x64xbf16>
    %21 = tpu.concatenate %17, %17, %17, %17, %17, %17, %17, %17 in 0 : vector<8x64xf32>, vector<8x64xf32>, vector<8x64xf32>, vector<8x64xf32>, vector<8x64xf32>, vector<8x64xf32>, vector<8x64xf32>, vector<8x64xf32> -> vector<64x64xf32>
    %22 = arith.mulf %21, %3 : vector<64x64xf32>
    %23 = arith.truncf %22 : vector<64x64xf32> to vector<64x64xbf16>
    %cst_15 = arith.constant dense<0.000000e+00> : vector<8x64xf32>
    %24 = tpu.matmul %15, %20, %cst_15 {dimension_numbers = #tpu.dot_dimension_numbers<[1], [1], [0], [0], [0, 0, 1, 0], [], []>} : vector<8x64xbf16>, vector<64x64xbf16>, vector<8x64xf32> -> vector<8x64xf32>
    %cst_16 = arith.constant dense<0xFF800000> : vector<8xf32>
    %25 = vector.multi_reduction <maximumf>, %24, %cst_16 [1] : vector<8x64xf32> to vector<8xf32>
    %26 = vector.shape_cast %25 : vector<8xf32> to vector<8x1xf32>
    %27 = vector.broadcast %26 : vector<8x1xf32> to vector<8x64xf32>
    %28 = arith.subf %24, %27 : vector<8x64xf32>
    %29 = math.exp %28 : vector<8x64xf32>
    %30 = arith.truncf %29 : vector<8x64xf32> to vector<8x64xbf16>
    %cst_17 = arith.constant dense<0.000000e+00> : vector<8x64xf32>
    %31 = tpu.matmul %30, %23, %cst_17 {dimension_numbers = #tpu.dot_dimension_numbers<[1], [0], [0], [1], [0, 0, 1, 1], [], []>} : vector<8x64xbf16>, vector<64x64xbf16>, vector<8x64xf32> -> vector<8x64xf32>
    %cst_18 = arith.constant dense<0.000000e+00> : vector<8x64xf32>
    %32 = tpu.matmul %30, %4, %cst_18 {dimension_numbers = #tpu.dot_dimension_numbers<[1], [0], [0], [1], [0, 0, 1, 1], [], []>} : vector<8x64xbf16>, vector<64x64xbf16>, vector<8x64xf32> -> vector<8x64xf32>
    %33 = tpu.reciprocal %32 {approx = true} : vector<8x64xf32> -> vector<8x64xf32>
    %34 = arith.mulf %31, %33 : vector<8x64xf32>
    %35 = vector.extract_strided_slice %13 {offsets = [8, 0], sizes = [8, 64], strides = [1, 1]} : vector<16x64xf32> to vector<8x64xf32>
    %36 = arith.truncf %35 : vector<8x64xf32> to vector<8x64xbf16>
    %37 = vector.extract_strided_slice %10 {offsets = [8, 0], sizes = [8, 64], strides = [1, 1]} : vector<16x64xf32> to vector<8x64xf32>
    %38 = vector.extract_strided_slice %7 {offsets = [8, 0], sizes = [8, 64], strides = [1, 1]} : vector<16x64xf32> to vector<8x64xf32>
    %39 = tpu.concatenate %37, %37, %37, %37, %37, %37, %37, %37 in 0 : vector<8x64xf32>, vector<8x64xf32>, vector<8x64xf32>, vector<8x64xf32>, vector<8x64xf32>, vector<8x64xf32>, vector<8x64xf32>, vector<8x64xf32> -> vector<64x64xf32>
    %40 = arith.mulf %39, %3 : vector<64x64xf32>
    %41 = arith.truncf %40 : vector<64x64xf32> to vector<64x64xbf16>
    %42 = tpu.concatenate %38, %38, %38, %38, %38, %38, %38, %38 in 0 : vector<8x64xf32>, vector<8x64xf32>, vector<8x64xf32>, vector<8x64xf32>, vector<8x64xf32>, vector<8x64xf32>, vector<8x64xf32>, vector<8x64xf32> -> vector<64x64xf32>
    %43 = arith.mulf %42, %3 : vector<64x64xf32>
    %44 = arith.truncf %43 : vector<64x64xf32> to vector<64x64xbf16>
    %cst_19 = arith.constant dense<0.000000e+00> : vector<8x64xf32>
    %45 = tpu.matmul %36, %41, %cst_19 {dimension_numbers = #tpu.dot_dimension_numbers<[1], [1], [0], [0], [0, 0, 1, 0], [], []>} : vector<8x64xbf16>, vector<64x64xbf16>, vector<8x64xf32> -> vector<8x64xf32>
    %cst_20 = arith.constant dense<0xFF800000> : vector<8xf32>
    %46 = vector.multi_reduction <maximumf>, %45, %cst_20 [1] : vector<8x64xf32> to vector<8xf32>
    %47 = vector.shape_cast %46 : vector<8xf32> to vector<8x1xf32>
    %48 = vector.broadcast %47 : vector<8x1xf32> to vector<8x64xf32>
    %49 = arith.subf %45, %48 : vector<8x64xf32>
    %50 = math.exp %49 : vector<8x64xf32>
    %51 = arith.truncf %50 : vector<8x64xf32> to vector<8x64xbf16>
    %cst_21 = arith.constant dense<0.000000e+00> : vector<8x64xf32>
    %52 = tpu.matmul %51, %44, %cst_21 {dimension_numbers = #tpu.dot_dimension_numbers<[1], [0], [0], [1], [0, 0, 1, 1], [], []>} : vector<8x64xbf16>, vector<64x64xbf16>, vector<8x64xf32> -> vector<8x64xf32>
    %cst_22 = arith.constant dense<0.000000e+00> : vector<8x64xf32>
    %53 = tpu.matmul %51, %4, %cst_22 {dimension_numbers = #tpu.dot_dimension_numbers<[1], [0], [0], [1], [0, 0, 1, 1], [], []>} : vector<8x64xbf16>, vector<64x64xbf16>, vector<8x64xf32> -> vector<8x64xf32>
    %54 = tpu.reciprocal %53 {approx = true} : vector<8x64xf32> -> vector<8x64xf32>
    %55 = arith.mulf %52, %54 : vector<8x64xf32>
    %56 = tpu.concatenate %34, %55 in 0 : vector<8x64xf32>, vector<8x64xf32> -> vector<16x64xf32>
    %57 = arith.truncf %56 : vector<16x64xf32> to vector<16x64xbf16>
    %c0_23 = arith.constant 0 : index
    %c0_24 = arith.constant 0 : index
    %58 = vector.load %arg7[%c0_23, %c0_24] : memref<64x64xbf16, #tpu.memory_space<vmem>>, vector<64x64xbf16>
    %cst_25 = arith.constant dense<0.000000e+00> : vector<16x64xf32>
    %59 = tpu.matmul %57, %58, %cst_25 {dimension_numbers = #tpu.dot_dimension_numbers<[1], [0], [0], [1], [0, 0, 1, 1], [], []>} : vector<16x64xbf16>, vector<64x64xbf16>, vector<16x64xf32> -> vector<16x64xf32>
    %c0_26 = arith.constant 0 : index
    %c0_27 = arith.constant 0 : index
    %60 = vector.load %arg8[%c0_26, %c0_27] : memref<1x64xf32, #tpu.memory_space<vmem>>, vector<1x64xf32>
    %61 = vector.broadcast %60 : vector<1x64xf32> to vector<16x64xf32>
    %62 = arith.addf %59, %61 : vector<16x64xf32>
    %63 = arith.addf %62, %2 : vector<16x64xf32>
    %c0_28 = arith.constant 0 : index
    %c0_29 = arith.constant 0 : index
    %64 = vector.load %arg9[%c0_28, %c0_29] : memref<1x64xf32, #tpu.memory_space<vmem>>, vector<1x64xf32>
    %c0_30 = arith.constant 0 : index
    %c0_31 = arith.constant 0 : index
    %65 = vector.load %arg10[%c0_30, %c0_31] : memref<1x64xf32, #tpu.memory_space<vmem>>, vector<1x64xf32>
    %cst_32 = arith.constant dense<0.000000e+00> : vector<16xf32>
    %66 = vector.multi_reduction <add>, %63, %cst_32 [1] : vector<16x64xf32> to vector<16xf32>
    %67 = vector.shape_cast %66 : vector<16xf32> to vector<16x1xf32>
    %cst_33 = arith.constant 6.400000e+01 : f32
    %68 = vector.broadcast %cst_33 : f32 to vector<16x1xf32>
    %69 = arith.divf %67, %68 : vector<16x1xf32>
    %70 = vector.broadcast %69 : vector<16x1xf32> to vector<16x64xf32>
    %71 = arith.subf %63, %70 : vector<16x64xf32>
    %72 = arith.mulf %71, %71 : vector<16x64xf32>
    %cst_34 = arith.constant dense<0.000000e+00> : vector<16xf32>
    %73 = vector.multi_reduction <add>, %72, %cst_34 [1] : vector<16x64xf32> to vector<16xf32>
    %74 = vector.shape_cast %73 : vector<16xf32> to vector<16x1xf32>
    %cst_35 = arith.constant 6.400000e+01 : f32
    %75 = vector.broadcast %cst_35 : f32 to vector<16x1xf32>
    %76 = arith.divf %74, %75 : vector<16x1xf32>
    %cst_36 = arith.constant 9.99999974E-6 : f32
    %77 = vector.broadcast %cst_36 : f32 to vector<16x1xf32>
    %78 = arith.addf %76, %77 : vector<16x1xf32>
    %79 = math.rsqrt %78 : vector<16x1xf32>
    %80 = vector.broadcast %79 : vector<16x1xf32> to vector<16x64xf32>
    %81 = arith.mulf %71, %80 : vector<16x64xf32>
    %82 = vector.broadcast %64 : vector<1x64xf32> to vector<16x64xf32>
    %83 = arith.mulf %81, %82 : vector<16x64xf32>
    %84 = vector.broadcast %65 : vector<1x64xf32> to vector<16x64xf32>
    %85 = arith.addf %83, %84 : vector<16x64xf32>
    %86 = arith.truncf %85 : vector<16x64xf32> to vector<16x64xbf16>
    %c0_37 = arith.constant 0 : index
    %c0_38 = arith.constant 0 : index
    %87 = vector.load %arg11[%c0_37, %c0_38] : memref<64x256xbf16, #tpu.memory_space<vmem>>, vector<64x256xbf16>
    %cst_39 = arith.constant dense<0.000000e+00> : vector<16x256xf32>
    %88 = tpu.matmul %86, %87, %cst_39 {dimension_numbers = #tpu.dot_dimension_numbers<[1], [0], [0], [1], [0, 0, 1, 1], [], []>} : vector<16x64xbf16>, vector<64x256xbf16>, vector<16x256xf32> -> vector<16x256xf32>
    %c0_40 = arith.constant 0 : index
    %c0_41 = arith.constant 0 : index
    %89 = vector.load %arg12[%c0_40, %c0_41] : memref<1x256xf32, #tpu.memory_space<vmem>>, vector<1x256xf32>
    %90 = vector.broadcast %89 : vector<1x256xf32> to vector<16x256xf32>
    %91 = arith.addf %88, %90 : vector<16x256xf32>
    %cst_42 = arith.constant 0.000000e+00 : f32
    %92 = vector.broadcast %cst_42 : f32 to vector<16x256xf32>
    %93 = arith.maximumf %91, %92 : vector<16x256xf32>
    %94 = arith.truncf %93 : vector<16x256xf32> to vector<16x256xbf16>
    %c0_43 = arith.constant 0 : index
    %c0_44 = arith.constant 0 : index
    %95 = vector.load %arg13[%c0_43, %c0_44] : memref<256x64xbf16, #tpu.memory_space<vmem>>, vector<256x64xbf16>
    %cst_45 = arith.constant dense<0.000000e+00> : vector<16x64xf32>
    %96 = tpu.matmul %94, %95, %cst_45 {dimension_numbers = #tpu.dot_dimension_numbers<[1], [0], [0], [1], [0, 0, 1, 1], [], []>} : vector<16x256xbf16>, vector<256x64xbf16>, vector<16x64xf32> -> vector<16x64xf32>
    %c0_46 = arith.constant 0 : index
    %c0_47 = arith.constant 0 : index
    %97 = vector.load %arg14[%c0_46, %c0_47] : memref<1x64xf32, #tpu.memory_space<vmem>>, vector<1x64xf32>
    %98 = vector.broadcast %97 : vector<1x64xf32> to vector<16x64xf32>
    %99 = arith.addf %96, %98 : vector<16x64xf32>
    %c0_48 = arith.constant 0 : index
    %c0_49 = arith.constant 0 : index
    %100 = vector.load %arg15[%c0_48, %c0_49] : memref<1x64xf32, #tpu.memory_space<vmem>>, vector<1x64xf32>
    %c0_50 = arith.constant 0 : index
    %c0_51 = arith.constant 0 : index
    %101 = vector.load %arg16[%c0_50, %c0_51] : memref<1x64xf32, #tpu.memory_space<vmem>>, vector<1x64xf32>
    %cst_52 = arith.constant dense<0.000000e+00> : vector<16xf32>
    %102 = vector.multi_reduction <add>, %99, %cst_52 [1] : vector<16x64xf32> to vector<16xf32>
    %103 = vector.shape_cast %102 : vector<16xf32> to vector<16x1xf32>
    %cst_53 = arith.constant 6.400000e+01 : f32
    %104 = vector.broadcast %cst_53 : f32 to vector<16x1xf32>
    %105 = arith.divf %103, %104 : vector<16x1xf32>
    %106 = vector.broadcast %105 : vector<16x1xf32> to vector<16x64xf32>
    %107 = arith.subf %99, %106 : vector<16x64xf32>
    %108 = arith.mulf %107, %107 : vector<16x64xf32>
    %cst_54 = arith.constant dense<0.000000e+00> : vector<16xf32>
    %109 = vector.multi_reduction <add>, %108, %cst_54 [1] : vector<16x64xf32> to vector<16xf32>
    %110 = vector.shape_cast %109 : vector<16xf32> to vector<16x1xf32>
    %cst_55 = arith.constant 6.400000e+01 : f32
    %111 = vector.broadcast %cst_55 : f32 to vector<16x1xf32>
    %112 = arith.divf %110, %111 : vector<16x1xf32>
    %cst_56 = arith.constant 9.99999974E-6 : f32
    %113 = vector.broadcast %cst_56 : f32 to vector<16x1xf32>
    %114 = arith.addf %112, %113 : vector<16x1xf32>
    %115 = math.rsqrt %114 : vector<16x1xf32>
    %116 = vector.broadcast %115 : vector<16x1xf32> to vector<16x64xf32>
    %117 = arith.mulf %107, %116 : vector<16x64xf32>
    %118 = vector.broadcast %100 : vector<1x64xf32> to vector<16x64xf32>
    %119 = arith.mulf %117, %118 : vector<16x64xf32>
    %120 = vector.broadcast %101 : vector<1x64xf32> to vector<16x64xf32>
    %121 = arith.addf %119, %120 : vector<16x64xf32>
    %122 = arith.addf %121, %99 : vector<16x64xf32>
    %c0_57 = arith.constant 0 : index
    %c0_58 = arith.constant 0 : index
    %123 = vector.load %arg18[%c0_57, %c0_58] : memref<16x64xf32, #tpu.memory_space<vmem>>, vector<16x64xf32>
    tpu.vector_store %arg18[%c0_57, %c0_58], %122 {strides = array<i32>} : memref<16x64xf32, #tpu.memory_space<vmem>>, vector<16x64xf32>,
    return
  }
  func.func @transform_0(%arg0: i32) -> (i32, i32) {
    %c0_i32 = arith.constant 0 : i32
    %c0_i32_0 = arith.constant 0 : i32
    %c0_i32_1 = arith.constant 0 : i32
    return %c0_i32, %c0_i32_0 : i32, i32
  }
  func.func @transform_1(%arg0: i32) -> (i32, i32) {
    %c0_i32 = arith.constant 0 : i32
    %c0_i32_0 = arith.constant 0 : i32
    %c0_i32_1 = arith.constant 0 : i32
    return %c0_i32, %c0_i32_0 : i32, i32
  }
  func.func @transform_2(%arg0: i32) -> (i32, i32) {
    %c0_i32 = arith.constant 0 : i32
    %c0_i32_0 = arith.constant 0 : i32
    %c0_i32_1 = arith.constant 0 : i32
    return %c0_i32, %c0_i32_0 : i32, i32
  }
  func.func @transform_3(%arg0: i32) -> (i32, i32) {
    %c0_i32 = arith.constant 0 : i32
    %c0_i32_0 = arith.constant 0 : i32
    %c0_i32_1 = arith.constant 0 : i32
    return %c0_i32, %c0_i32_0 : i32, i32
  }
  func.func @transform_4(%arg0: i32) -> (i32, i32) {
    %c0_i32 = arith.constant 0 : i32
    %c0_i32_0 = arith.constant 0 : i32
    %c0_i32_1 = arith.constant 0 : i32
    return %c0_i32, %c0_i32_0 : i32, i32
  }
  func.func @transform_5(%arg0: i32) -> (i32, i32) {
    %c0_i32 = arith.constant 0 : i32
    %c0_i32_0 = arith.constant 0 : i32
    %c0_i32_1 = arith.constant 0 : i32
    return %c0_i32, %c0_i32_0 : i32, i32
  }
  func.func @transform_6(%arg0: i32) -> (i32, i32) {
    %c0_i32 = arith.constant 0 : i32
    %c0_i32_0 = arith.constant 0 : i32
    %c0_i32_1 = arith.constant 0 : i32
    return %c0_i32, %c0_i32_0 : i32, i32
  }
  func.func @transform_7(%arg0: i32) -> (i32, i32) {
    %c0_i32 = arith.constant 0 : i32
    %c0_i32_0 = arith.constant 0 : i32
    %c0_i32_1 = arith.constant 0 : i32
    return %c0_i32, %c0_i32_0 : i32, i32
  }
  func.func @transform_8(%arg0: i32) -> (i32, i32) {
    %c0_i32 = arith.constant 0 : i32
    %c0_i32_0 = arith.constant 0 : i32
    %c0_i32_1 = arith.constant 0 : i32
    return %c0_i32, %c0_i32_0 : i32, i32
  }
  func.func @transform_9(%arg0: i32) -> (i32, i32) {
    %c0_i32 = arith.constant 0 : i32
    %c0_i32_0 = arith.constant 0 : i32
    %c0_i32_1 = arith.constant 0 : i32
    return %c0_i32, %c0_i32_0 : i32, i32
  }
  func.func @transform_10(%arg0: i32) -> (i32, i32) {
    %c0_i32 = arith.constant 0 : i32
    %c0_i32_0 = arith.constant 0 : i32
    %c0_i32_1 = arith.constant 0 : i32
    return %c0_i32, %c0_i32_0 : i32, i32
  }
  func.func @transform_11(%arg0: i32) -> (i32, i32) {
    %c0_i32 = arith.constant 0 : i32
    %c0_i32_0 = arith.constant 0 : i32
    %c0_i32_1 = arith.constant 0 : i32
    return %c0_i32, %c0_i32_0 : i32, i32
  }
  func.func @transform_12(%arg0: i32) -> (i32, i32) {
    %c0_i32 = arith.constant 0 : i32
    %c0_i32_0 = arith.constant 0 : i32
    %c0_i32_1 = arith.constant 0 : i32
    return %c0_i32, %c0_i32_0 : i32, i32
  }
  func.func @transform_13(%arg0: i32) -> (i32, i32) {
    %c0_i32 = arith.constant 0 : i32
    %c0_i32_0 = arith.constant 0 : i32
    %c0_i32_1 = arith.constant 0 : i32
    return %c0_i32, %c0_i32_0 : i32, i32
  }
  func.func @transform_14(%arg0: i32) -> (i32, i32) {
    %c0_i32 = arith.constant 0 : i32
    %c0_i32_0 = arith.constant 0 : i32
    %c0_i32_1 = arith.constant 0 : i32
    return %c0_i32, %c0_i32_0 : i32, i32
  }
  func.func @transform_15(%arg0: i32) -> (i32, i32) {
    %c0_i32 = arith.constant 0 : i32
    %c0_i32_0 = arith.constant 0 : i32
    %c0_i32_1 = arith.constant 0 : i32
    return %c0_i32, %c0_i32_0 : i32, i32
  }
  func.func @transform_16(%arg0: i32) -> (i32, i32) {
    %c0_i32 = arith.constant 0 : i32
    %c0_i32_0 = arith.constant 0 : i32
    %c0_i32_1 = arith.constant 0 : i32
    return %c0_i32, %c0_i32_0 : i32, i32
  }
  func.func @transform_17(%arg0: i32) -> (i32, i32) {
    %c0_i32 = arith.constant 0 : i32
    %c0_i32_0 = arith.constant 0 : i32
    %c0_i32_1 = arith.constant 0 : i32
    return %c0_i32, %c0_i32_0 : i32, i32
  }
}

</mosaic_0001>

<llo_original>
// kernel: eq.10
$region0: #{eq.10}
  %s0 = inlined_call_operand.vmem [shape: s32[8,8], index: 0, kind: input, shape index: {}]
  %s1 = inlined_call_operand.vmem [shape: s32[64], index: 1, kind: output, shape index: {}]
  $region1: #{eq.10} parent=0
    #allocation0 [shape = 'u8[4096]{0}', space=vmem, size = 0x1000, scoped, tag = 'scoped mem for output reshape']
    %v2 = vld [vmem:[%s0] sm:$0x1]
    %vm3 = vcmask 64512
    %4 = vst.msk [vmem:[#allocation0] sm:$0x1] %vm3, %v2
    %s5 = scalar_lea.vmem %s0, 7
    %v6 = vld [vmem:[%s5] sm:$0x1]
    %7 = vrot.lane.b32.xlu0 %v6, 56
    %v8 = vpop.permute.xlu0 %7
    %vm9 = vcmask 523712
    %10 = vst.msk [vmem:[#allocation0] sm:$0x1] %vm9, %v8
    %s11 = scalar_lea.vmem %s0, 6
    %v12 = vld [vmem:[%s11] sm:$0x1]
    %13 = vrot.lane.b32.xlu0 %v12, 48
    %v14 = vpop.permute.xlu0 %13
    %vm15 = vcmask 458112
    %16 = vst.msk [vmem:[#allocation0] sm:$0x1] %vm15, %v14
    %s17 = scalar_lea.vmem %s0, 5
    %v18 = vld [vmem:[%s17] sm:$0x1]
    %19 = vrot.lane.b32.xlu0 %v18, 40
    %v20 = vpop.permute.xlu0 %19
    %vm21 = vcmask 392512
    %22 = vst.msk [vmem:[#allocation0] sm:$0x1] %vm21, %v20
    %s23 = scalar_lea.vmem %s0, 4
    %v24 = vld [vmem:[%s23] sm:$0x1]
    %25 = vrot.lane.b32.xlu0 %v24, 32
    %v26 = vpop.permute.xlu0 %25
    %vm27 = vcmask 326912
    %28 = vst.msk [vmem:[#allocation0] sm:$0x1] %vm27, %v26
    %s29 = scalar_lea.vmem %s0, 3
    %v30 = vld [vmem:[%s29] sm:$0x1]
    %31 = vrot.lane.b32.xlu0 %v30, 24
    %v32 = vpop.permute.xlu0 %31
    %vm33 = vcmask 261312
    %34 = vst.msk [vmem:[#allocation0] sm:$0x1] %vm33, %v32
    %s35 = scalar_lea.vmem %s0, 2
    %v36 = vld [vmem:[%s35] sm:$0x1]
    %37 = vrot.lane.b32.xlu0 %v36, 16
    %v38 = vpop.permute.xlu0 %37
    %vm39 = vcmask 195712
    %40 = vst.msk [vmem:[#allocation0] sm:$0x1] %vm39, %v38
    %s41 = scalar_lea.vmem %s0, 1
    %v42 = vld [vmem:[%s41] sm:$0x1]
    %43 = vrot.lane.b32.xlu0 %v42, 8
    %v44 = vpop.permute.xlu0 %43
    %vm45 = vcmask 130112
    %46 = vst.msk [vmem:[#allocation0] sm:$0x1] %vm45, %v44
    %s48 = ssub.s32 2, 1
    %v49 = vld [vmem:[#allocation0] sm:%s48]
    %s51 = ssub.s32 2, 1
    %52 = vst [vmem:[%s1] sm:%s51] %v49

// kernel: encoder_block.1
$region0: #{encoder_block.1}
  #allocation0 [shape = 'u32[]', space=smem, size = 0x4, offset = 0x4, fixed_abs, tag = 'smem constant byte address 0x4 - core index']
  #allocation1 [shape = 'u32[72,128]{1,0:T(1,128)}', space=vmem, size = 0x9000, scoped, tag = 'internal scratch']
  %s0 = inlined_call_operand.vmem [shape: f32[16,64], index: 0, kind: input, shape index: {}]
  %s1 = inlined_call_operand.vmem [shape: f32[16,64], index: 1, kind: input, shape index: {}]
  %s2 = inlined_call_operand.vmem [shape: f32[16,64], index: 2, kind: input, shape index: {}]
  %s3 = inlined_call_operand.vmem [shape: bf16[64,64], index: 3, kind: input, shape index: {}]
  %s4 = inlined_call_operand.vmem [shape: bf16[64,64], index: 4, kind: input, shape index: {}]
  %s5 = inlined_call_operand.vmem [shape: bf16[64,64], index: 5, kind: input, shape index: {}]
  %s6 = inlined_call_operand.vmem [shape: bf16[64,64], index: 6, kind: input, shape index: {}]
  %s7 = inlined_call_operand.vmem [shape: f32[1,64], index: 7, kind: input, shape index: {}]
  %s8 = inlined_call_operand.vmem [shape: f32[1,64], index: 8, kind: input, shape index: {}]
  %s9 = inlined_call_operand.vmem [shape: f32[1,64], index: 9, kind: input, shape index: {}]
  %s10 = inlined_call_operand.vmem [shape: bf16[64,256], index: 10, kind: input, shape index: {}]
  %s11 = inlined_call_operand.vmem [shape: f32[1,256], index: 11, kind: input, shape index: {}]
  %s12 = inlined_call_operand.vmem [shape: bf16[256,64], index: 12, kind: input, shape index: {}]
  %s13 = inlined_call_operand.vmem [shape: f32[1,64], index: 13, kind: input, shape index: {}]
  %s14 = inlined_call_operand.vmem [shape: f32[1,64], index: 14, kind: input, shape index: {}]
  %s15 = inlined_call_operand.vmem [shape: f32[1,64], index: 15, kind: input, shape index: {}]
  %s16 = inlined_call_operand.vmem [shape: f32[64,64], index: 16, kind: input, shape index: {}]
  %s17 = inlined_call_operand.hbm [shape: f32[16,64], index: 17, kind: output, shape index: {}]
  %s18 = sld [smem:[#allocation0]]
  $region78: #{encoder_block.1} parent=0
    _
  %s20 = ssub.s32 1, %s18
  %s21 = scalar_select 0, %s20, %s18
  $region1: #{encoder_block.1} parent=0
    #allocation2 [shape = 'u8[8192]{0}', space=vmem, size = 0x2000, scoped, tag = 'output window, operand 0, single buffered']
    #allocation3 [shape = 's32[1]{0}', space=sflag, size = 0x4, scoped, tag = 'scoped memory for encoder_block.1']
    %22 = vsyncpa [#allocation3], 0
    // Predicated region
    $region2: #{encoder_block.1} parent=1 // pred_check
      _
    $region3: #{encoder_block.1} parent=1 // pred_check_branch
      %24 = sbr.rel (0) target = $region5
    $region4: #{encoder_block.1} parent=1 // pred_region
      _
    $region5: #{encoder_block.1} parent=1 // pred_fallthru
      _
    // Predicated region
    $region6: #{encoder_block.1} parent=1 // pred_check
      _
    $region7: #{encoder_block.1} parent=1 // pred_check_branch
      %26 = sbr.rel (0) target = $region9
    $region8: #{encoder_block.1} parent=1 // pred_region
      _
    $region9: #{encoder_block.1} parent=1 // pred_fallthru
      _
    // Predicated region
    $region10: #{encoder_block.1} parent=1 // pred_check
      _
    $region11: #{encoder_block.1} parent=1 // pred_check_branch
      %28 = sbr.rel (0) target = $region13
    $region12: #{encoder_block.1} parent=1 // pred_region
      _
    $region13: #{encoder_block.1} parent=1 // pred_fallthru
      _
    // Predicated region
    $region14: #{encoder_block.1} parent=1 // pred_check
      _
    $region15: #{encoder_block.1} parent=1 // pred_check_branch
      %30 = sbr.rel (0) target = $region17
    $region16: #{encoder_block.1} parent=1 // pred_region
      _
    $region17: #{encoder_block.1} parent=1 // pred_fallthru
      _
    // Predicated region
    $region18: #{encoder_block.1} parent=1 // pred_check
      _
    $region19: #{encoder_block.1} parent=1 // pred_check_branch
      %32 = sbr.rel (0) target = $region21
    $region20: #{encoder_block.1} parent=1 // pred_region
      _
    $region21: #{encoder_block.1} parent=1 // pred_fallthru
      _
    // Predicated region
    $region22: #{encoder_block.1} parent=1 // pred_check
      _
    $region23: #{encoder_block.1} parent=1 // pred_check_branch
      %34 = sbr.rel (0) target = $region25
    $region24: #{encoder_block.1} parent=1 // pred_region
      _
    $region25: #{encoder_block.1} parent=1 // pred_fallthru
      _
    // Predicated region
    $region26: #{encoder_block.1} parent=1 // pred_check
      _
    $region27: #{encoder_block.1} parent=1 // pred_check_branch
      %36 = sbr.rel (0) target = $region29
    $region28: #{encoder_block.1} parent=1 // pred_region
      _
    $region29: #{encoder_block.1} parent=1 // pred_fallthru
      _
    // Predicated region
    $region30: #{encoder_block.1} parent=1 // pred_check
      _
    $region31: #{encoder_block.1} parent=1 // pred_check_branch
      %38 = sbr.rel (0) target = $region33
    $region32: #{encoder_block.1} parent=1 // pred_region
      _
    $region33: #{encoder_block.1} parent=1 // pred_fallthru
      _
    // Predicated region
    $region34: #{encoder_block.1} parent=1 // pred_check
      _
    $region35: #{encoder_block.1} parent=1 // pred_check_branch
      %40 = sbr.rel (0) target = $region37
    $region36: #{encoder_block.1} parent=1 // pred_region
      _
    $region37: #{encoder_block.1} parent=1 // pred_fallthru
      _
    // Predicated region
    $region38: #{encoder_block.1} parent=1 // pred_check
      _
    $region39: #{encoder_block.1} parent=1 // pred_check_branch
      %42 = sbr.rel (0) target = $region41
    $region40: #{encoder_block.1} parent=1 // pred_region
      _
    $region41: #{encoder_block.1} parent=1 // pred_fallthru
      _
    // Predicated region
    $region42: #{encoder_block.1} parent=1 // pred_check
      _
    $region43: #{encoder_block.1} parent=1 // pred_check_branch
      %44 = sbr.rel (0) target = $region45
    $region44: #{encoder_block.1} parent=1 // pred_region
      _
    $region45: #{encoder_block.1} parent=1 // pred_fallthru
      _
    // Predicated region
    $region46: #{encoder_block.1} parent=1 // pred_check
      _
    $region47: #{encoder_block.1} parent=1 // pred_check_branch
      %46 = sbr.rel (0) target = $region49
    $region48: #{encoder_block.1} parent=1 // pred_region
      _
    $region49: #{encoder_block.1} parent=1 // pred_fallthru
      _
    // Predicated region
    $region50: #{encoder_block.1} parent=1 // pred_check
      _
    $region51: #{encoder_block.1} parent=1 // pred_check_branch
      %48 = sbr.rel (0) target = $region53
    $region52: #{encoder_block.1} parent=1 // pred_region
      _
    $region53: #{encoder_block.1} parent=1 // pred_fallthru
      _
    // Predicated region
    $region54: #{encoder_block.1} parent=1 // pred_check
      _
    $region55: #{encoder_block.1} parent=1 // pred_check_branch
      %50 = sbr.rel (0) target = $region57
    $region56: #{encoder_block.1} parent=1 // pred_region
      _
    $region57: #{encoder_block.1} parent=1 // pred_fallthru
      _
    // Predicated region
    $region58: #{encoder_block.1} parent=1 // pred_check
      _
    $region59: #{encoder_block.1} parent=1 // pred_check_branch
      %52 = sbr.rel (0) target = $region61
    $region60: #{encoder_block.1} parent=1 // pred_region
      _
    $region61: #{encoder_block.1} parent=1 // pred_fallthru
      _
    // Predicated region
    $region62: #{encoder_block.1} parent=1 // pred_check
      _
    $region63: #{encoder_block.1} parent=1 // pred_check_branch
      %54 = sbr.rel (0) target = $region65
    $region64: #{encoder_block.1} parent=1 // pred_region
      _
    $region65: #{encoder_block.1} parent=1 // pred_fallthru
      _
    // Predicated region
    $region66: #{encoder_block.1} parent=1 // pred_check
      _
    $region67: #{encoder_block.1} parent=1 // pred_check_branch
      %56 = sbr.rel (0) target = $region69
    $region68: #{encoder_block.1} parent=1 // pred_region
      _
    $region69: #{encoder_block.1} parent=1 // pred_fallthru
      _
    %v58 = vld [vmem:[%s0] sm:$0xff]
    %v59 = vld [vmem:[%s0 + $0x8] sm:$0xff]
    %v60 = vld [vmem:[%s1] sm:$0xff]
    %v61 = vld [vmem:[%s1 + $0x8] sm:$0xff]
    %v62 = vld [vmem:[%s2] sm:$0xff]
    %v63 = vld [vmem:[%s2 + $0x8] sm:$0xff]
    %v64 = vld [vmem:[%s16] sm:$0xff]
    %v65 = vld [vmem:[%s16 + $0x8] sm:$0xff]
    %v66 = vld [vmem:[%s16 + $0x10] sm:$0xff]
    %v67 = vld [vmem:[%s16 + $0x18] sm:$0xff]
    %v68 = vld [vmem:[%s16 + $0x20] sm:$0xff]
    %v69 = vld [vmem:[%s16 + $0x28] sm:$0xff]
    %v70 = vld [vmem:[%s16 + $0x30] sm:$0xff]
    %v71 = vld [vmem:[%s16 + $0x38] sm:$0xff]
    %v72 = vpack.c.bf16 %v65, %v64
    %v73 = vpack.c.bf16 %v67, %v66
    %v74 = vpack.c.bf16 %v69, %v68
    %v75 = vpack.c.bf16 %v71, %v70
    %v76 = vpack.c.bf16 %v59, %v58
    %v77 = vld [vmem:[%s3] sm:$0xf]
    %v78 = vld [vmem:[%s3 + $0x4] sm:$0xf]
    %v79 = vld [vmem:[%s3 + $0x8] sm:$0xf]
    %v80 = vld [vmem:[%s3 + $0xc] sm:$0xf]
    %v81 = vld [vmem:[%s3 + $0x10] sm:$0xf]
    %v82 = vld [vmem:[%s3 + $0x14] sm:$0xf]
    %v83 = vld [vmem:[%s3 + $0x18] sm:$0xf]
    %v84 = vld [vmem:[%s3 + $0x1c] sm:$0xf]
    %v93 = vunpack.c.l.b16 %v77
    %v94 = vunpack.c.l.b16 %v78
    %v95 = vunpack.c.l.b16 %v79
    %v96 = vunpack.c.l.b16 %v80
    %v97 = vunpack.c.l.b16 %v81
    %v98 = vunpack.c.l.b16 %v82
    %v99 = vunpack.c.l.b16 %v83
    %v100 = vunpack.c.l.b16 %v84
    %v101 = vpack.c.b16 %v94, %v93
    %v102 = vpack.c.b16 %v96, %v95
    %v103 = vpack.c.b16 %v98, %v97
    %v104 = vpack.c.b16 %v100, %v99
    %vm109 = vcmask 523264
    %v111 = vsel %vm109, %v76, 0
    %113 = vmatpush.bf16.msra.mxu0 0
    %114 = vmatpush.bf16.msra.mxu0 0
    %115 = vmatpush.bf16.msra.mxu0 0
    %116 = vmatpush.bf16.msra.mxu0 0
    %117 = vmatpush.bf16.msra.mxu0 %v104
    %118 = vmatpush.bf16.msra.mxu0 %v103
    %119 = vmatpush.bf16.msra.mxu0 %v102
    %120 = vmatpush.bf16.msra.mxu0 %v101
    %121 = vmatmul.bf16.gmra.mxu0 %v111
    %v122 = vpop.f32.mrf.mxu0
    %v123 = vadd.f32 0.0, %v122
    %v124 = vpop.f32.mrf.mxu0
    %v125 = vadd.f32 0.0, %v124
    %126 = vdwg.mxu0
    %v127 = vpack.c.bf16 %v61, %v60
    %v128 = vld [vmem:[%s4] sm:$0xf]
    %v129 = vld [vmem:[%s4 + $0x4] sm:$0xf]
    %v130 = vld [vmem:[%s4 + $0x8] sm:$0xf]
    %v131 = vld [vmem:[%s4 + $0xc] sm:$0xf]
    %v132 = vld [vmem:[%s4 + $0x10] sm:$0xf]
    %v133 = vld [vmem:[%s4 + $0x14] sm:$0xf]
    %v134 = vld [vmem:[%s4 + $0x18] sm:$0xf]
    %v135 = vld [vmem:[%s4 + $0x1c] sm:$0xf]
    %v144 = vunpack.c.l.b16 %v128
    %v145 = vunpack.c.l.b16 %v129
    %v146 = vunpack.c.l.b16 %v130
    %v147 = vunpack.c.l.b16 %v131
    %v148 = vunpack.c.l.b16 %v132
    %v149 = vunpack.c.l.b16 %v133
    %v150 = vunpack.c.l.b16 %v134
    %v151 = vunpack.c.l.b16 %v135
    %v152 = vpack.c.b16 %v145, %v144
    %v153 = vpack.c.b16 %v147, %v146
    %v154 = vpack.c.b16 %v149, %v148
    %v155 = vpack.c.b16 %v151, %v150
    %v161 = vsel %vm109, %v127, 0
    %163 = vmatpush.bf16.msra.mxu0 0
    %164 = vmatpush.bf16.msra.mxu0 0
    %165 = vmatpush.bf16.msra.mxu0 0
    %166 = vmatpush.bf16.msra.mxu0 0
    %167 = vmatpush.bf16.msra.mxu0 %v155
    %168 = vmatpush.bf16.msra.mxu0 %v154
    %169 = vmatpush.bf16.msra.mxu0 %v153
    %170 = vmatpush.bf16.msra.mxu0 %v152
    %171 = vmatmul.bf16.gmra.mxu0 %v161
    %v172 = vpop.f32.mrf.mxu0
    %v173 = vadd.f32 0.0, %v172
    %v174 = vpop.f32.mrf.mxu0
    %v175 = vadd.f32 0.0, %v174
    %176 = vdwg.mxu0
    %v177 = vpack.c.bf16 %v63, %v62
    %v178 = vld [vmem:[%s5] sm:$0xf]
    %v179 = vld [vmem:[%s5 + $0x4] sm:$0xf]
    %v180 = vld [vmem:[%s5 + $0x8] sm:$0xf]
    %v181 = vld [vmem:[%s5 + $0xc] sm:$0xf]
    %v182 = vld [vmem:[%s5 + $0x10] sm:$0xf]
    %v183 = vld [vmem:[%s5 + $0x14] sm:$0xf]
    %v184 = vld [vmem:[%s5 + $0x18] sm:$0xf]
    %v185 = vld [vmem:[%s5 + $0x1c] sm:$0xf]
    %v194 = vunpack.c.l.b16 %v178
    %v195 = vunpack.c.l.b16 %v179
    %v196 = vunpack.c.l.b16 %v180
    %v197 = vunpack.c.l.b16 %v181
    %v198 = vunpack.c.l.b16 %v182
    %v199 = vunpack.c.l.b16 %v183
    %v200 = vunpack.c.l.b16 %v184
    %v201 = vunpack.c.l.b16 %v185
    %v202 = vpack.c.b16 %v195, %v194
    %v203 = vpack.c.b16 %v197, %v196
    %v204 = vpack.c.b16 %v199, %v198
    %v205 = vpack.c.b16 %v201, %v200
    %v211 = vsel %vm109, %v177, 0
    %213 = vmatpush.bf16.msra.mxu0 0
    %214 = vmatpush.bf16.msra.mxu0 0
    %215 = vmatpush.bf16.msra.mxu0 0
    %216 = vmatpush.bf16.msra.mxu0 0
    %217 = vmatpush.bf16.msra.mxu0 %v205
    %218 = vmatpush.bf16.msra.mxu0 %v204
    %219 = vmatpush.bf16.msra.mxu0 %v203
    %220 = vmatpush.bf16.msra.mxu0 %v202
    %221 = vmatmul.bf16.gmra.mxu0 %v211
    %v222 = vpop.f32.mrf.mxu0
    %v223 = vadd.f32 0.0, %v222
    %v224 = vpop.f32.mrf.mxu0
    %v225 = vadd.f32 0.0, %v224
    %226 = vdwg.mxu0
    %v227 = vpack.c.bf16 %v223, %v223
    %v228 = vmul.f32 %v173, %v64
    %v229 = vmul.f32 %v173, %v65
    %v230 = vmul.f32 %v173, %v66
    %v231 = vmul.f32 %v173, %v67
    %v232 = vmul.f32 %v173, %v68
    %v233 = vmul.f32 %v173, %v69
    %v234 = vmul.f32 %v173, %v70
    %v235 = vmul.f32 %v173, %v71
    %v236 = vpack.c.bf16 %v229, %v228
    %v237 = vpack.c.bf16 %v231, %v230
    %v238 = vpack.c.bf16 %v233, %v232
    %v239 = vpack.c.bf16 %v235, %v234
    %v240 = vmul.f32 %v123, %v64
    %v241 = vmul.f32 %v123, %v65
    %v242 = vmul.f32 %v123, %v66
    %v243 = vmul.f32 %v123, %v67
    %v244 = vmul.f32 %v123, %v68
    %v245 = vmul.f32 %v123, %v69
    %v246 = vmul.f32 %v123, %v70
    %v247 = vmul.f32 %v123, %v71
    %v248 = vpack.c.bf16 %v241, %v240
    %v249 = vpack.c.bf16 %v243, %v242
    %v250 = vpack.c.bf16 %v245, %v244
    %v251 = vpack.c.bf16 %v247, %v246
    %v253 = vsel %vm109, %v227, 0
    %v256 = vsel %vm109, %v236, 0
    %v259 = vsel %vm109, %v237, 0
    %v262 = vsel %vm109, %v238, 0
    %v265 = vsel %vm109, %v239, 0
    %267 = vmatpush.bf16.xpose.msra.mxu0 0
    %268 = vmatpush.bf16.xpose.msra.mxu0 0
    %269 = vmatpush.bf16.xpose.msra.mxu0 0
    %270 = vmatpush.bf16.xpose.msra.mxu0 0
    %271 = vmatpush.bf16.xpose.msra.mxu0 %v265
    %272 = vmatpush.bf16.xpose.msra.mxu0 %v262
    %273 = vmatpush.bf16.xpose.msra.mxu0 %v259
    %274 = vmatpush.bf16.xpose.msra.mxu0 %v256
    %275 = vmatmul.bf16.gmra.mxu0 %v253
    %v276 = vpop.f32.mrf.mxu0
    %v277 = vadd.f32 0.0, %v276
    %v278 = vpop.f32.mrf.mxu0
    %279 = vdwg.mxu0
    %v280 = vsel %vm109, %v277, -inf
    %281 = vmax.xlane.f32.xlu0 %v280
    %v282 = vpop.xlane.xlu0 %281
    %v283 = vsub.f32 %v277, %v282
    %v284 = vmul.f32 %v283, 1.442695
    %v285 = vpow.pop %v284
    %v286 = vpack.c.bf16 %v285, %v285
    %v288 = vsel %vm109, %v286, 0
    %290 = vmatpush.bf16.msra.mxu0 0
    %291 = vmatpush.bf16.msra.mxu0 0
    %292 = vmatpush.bf16.msra.mxu0 0
    %293 = vmatpush.bf16.msra.mxu0 0
    %294 = vmatpush.bf16.msra.mxu0 %v251
    %295 = vmatpush.bf16.msra.mxu0 %v250
    %296 = vmatpush.bf16.msra.mxu0 %v249
    %297 = vmatpush.bf16.msra.mxu0 %v248
    %298 = vmatmul.bf16.gmra.mxu0 %v288
    %v299 = vpop.f32.mrf.mxu0
    %v300 = vadd.f32 0.0, %v299
    %v301 = vpop.f32.mrf.mxu0
    %302 = vdwg.mxu0
    %303 = vmatpush.bf16.msra.mxu0 0
    %304 = vmatpush.bf16.msra.mxu0 0
    %305 = vmatpush.bf16.msra.mxu0 0
    %306 = vmatpush.bf16.msra.mxu0 0
    %307 = vmatpush.bf16.msra.mxu0 %v75
    %308 = vmatpush.bf16.msra.mxu0 %v74
    %309 = vmatpush.bf16.msra.mxu0 %v73
    %310 = vmatpush.bf16.msra.mxu0 %v72
    %311 = vmatmul.bf16.gmra.mxu0 %v288
    %v312 = vpop.f32.mrf.mxu0
    %v313 = vadd.f32 0.0, %v312
    %v314 = vpop.f32.mrf.mxu0
    %315 = vdwg.mxu0
    %v316 = vrcp.pop %v313
    %v317 = vmul.f32 %v300, %v316
    %v318 = vpack.c.bf16 %v225, %v225
    %v319 = vmul.f32 %v175, %v64
    %v320 = vmul.f32 %v175, %v65
    %v321 = vmul.f32 %v175, %v66
    %v322 = vmul.f32 %v175, %v67
    %v323 = vmul.f32 %v175, %v68
    %v324 = vmul.f32 %v175, %v69
    %v325 = vmul.f32 %v175, %v70
    %v326 = vmul.f32 %v175, %v71
    %v327 = vpack.c.bf16 %v320, %v319
    %v328 = vpack.c.bf16 %v322, %v321
    %v329 = vpack.c.bf16 %v324, %v323
    %v330 = vpack.c.bf16 %v326, %v325
    %v331 = vmul.f32 %v125, %v64
    %v332 = vmul.f32 %v125, %v65
    %v333 = vmul.f32 %v125, %v66
    %v334 = vmul.f32 %v125, %v67
    %v335 = vmul.f32 %v125, %v68
    %v336 = vmul.f32 %v125, %v69
    %v337 = vmul.f32 %v125, %v70
    %v338 = vmul.f32 %v125, %v71
    %v339 = vpack.c.bf16 %v332, %v331
    %v340 = vpack.c.bf16 %v334, %v333
    %v341 = vpack.c.bf16 %v336, %v335
    %v342 = vpack.c.bf16 %v338, %v337
    %v344 = vsel %vm109, %v318, 0
    %v347 = vsel %vm109, %v327, 0
    %v350 = vsel %vm109, %v328, 0
    %v353 = vsel %vm109, %v329, 0
    %v356 = vsel %vm109, %v330, 0
    %358 = vmatpush.bf16.xpose.msra.mxu0 0
    %359 = vmatpush.bf16.xpose.msra.mxu0 0
    %360 = vmatpush.bf16.xpose.msra.mxu0 0
    %361 = vmatpush.bf16.xpose.msra.mxu0 0
    %362 = vmatpush.bf16.xpose.msra.mxu0 %v356
    %363 = vmatpush.bf16.xpose.msra.mxu0 %v353
    %364 = vmatpush.bf16.xpose.msra.mxu0 %v350
    %365 = vmatpush.bf16.xpose.msra.mxu0 %v347
    %366 = vmatmul.bf16.gmra.mxu0 %v344
    %v367 = vpop.f32.mrf.mxu0
    %v368 = vadd.f32 0.0, %v367
    %v369 = vpop.f32.mrf.mxu0
    %370 = vdwg.mxu0
    %v371 = vsel %vm109, %v368, -inf
    %372 = vmax.xlane.f32.xlu0 %v371
    %v373 = vpop.xlane.xlu0 %372
    %v374 = vsub.f32 %v368, %v373
    %v375 = vmul.f32 %v374, 1.442695
    %v376 = vpow.pop %v375
    %v377 = vpack.c.bf16 %v376, %v376
    %v379 = vsel %vm109, %v377, 0
    %381 = vmatpush.bf16.msra.mxu0 0
    %382 = vmatpush.bf16.msra.mxu0 0
    %383 = vmatpush.bf16.msra.mxu0 0
    %384 = vmatpush.bf16.msra.mxu0 0
    %385 = vmatpush.bf16.msra.mxu0 %v342
    %386 = vmatpush.bf16.msra.mxu0 %v341
    %387 = vmatpush.bf16.msra.mxu0 %v340
    %388 = vmatpush.bf16.msra.mxu0 %v339
    %389 = vmatmul.bf16.gmra.mxu0 %v379
    %v390 = vpop.f32.mrf.mxu0
    %v391 = vadd.f32 0.0, %v390
    %v392 = vpop.f32.mrf.mxu0
    %393 = vdwg.mxu0
    %394 = vmatpush.bf16.msra.mxu0 0
    %395 = vmatpush.bf16.msra.mxu0 0
    %396 = vmatpush.bf16.msra.mxu0 0
    %397 = vmatpush.bf16.msra.mxu0 0
    %398 = vmatpush.bf16.msra.mxu0 %v75
    %399 = vmatpush.bf16.msra.mxu0 %v74
    %400 = vmatpush.bf16.msra.mxu0 %v73
    %401 = vmatpush.bf16.msra.mxu0 %v72
    %402 = vmatmul.bf16.gmra.mxu0 %v379
    %v403 = vpop.f32.mrf.mxu0
    %v404 = vadd.f32 0.0, %v403
    %v405 = vpop.f32.mrf.mxu0
    %406 = vdwg.mxu0
    %v407 = vrcp.pop %v404
    %v408 = vmul.f32 %v391, %v407
    %v409 = vpack.c.bf16 %v408, %v317
    %v410 = vld [vmem:[%s6] sm:$0xf]
    %v411 = vld [vmem:[%s6 + $0x4] sm:$0xf]
    %v412 = vld [vmem:[%s6 + $0x8] sm:$0xf]
    %v413 = vld [vmem:[%s6 + $0xc] sm:$0xf]
    %v414 = vld [vmem:[%s6 + $0x10] sm:$0xf]
    %v415 = vld [vmem:[%s6 + $0x14] sm:$0xf]
    %v416 = vld [vmem:[%s6 + $0x18] sm:$0xf]
    %v417 = vld [vmem:[%s6 + $0x1c] sm:$0xf]
    %v418 = vld [vmem:[%s7] sm:$0x1]
    %v420 = vperm.slane %v418, 0
    %v430 = vunpack.c.l.b16 %v410
    %v431 = vunpack.c.l.b16 %v411
    %v432 = vunpack.c.l.b16 %v412
    %v433 = vunpack.c.l.b16 %v413
    %v434 = vunpack.c.l.b16 %v414
    %v435 = vunpack.c.l.b16 %v415
    %v436 = vunpack.c.l.b16 %v416
    %v437 = vunpack.c.l.b16 %v417
    %v438 = vpack.c.b16 %v431, %v430
    %v439 = vpack.c.b16 %v433, %v432
    %v440 = vpack.c.b16 %v435, %v434
    %v441 = vpack.c.b16 %v437, %v436
    %v447 = vsel %vm109, %v409, 0
    %449 = vmatpush.bf16.msra.mxu0 0
    %450 = vmatpush.bf16.msra.mxu0 0
    %451 = vmatpush.bf16.msra.mxu0 0
    %452 = vmatpush.bf16.msra.mxu0 0
    %453 = vmatpush.bf16.msra.mxu0 %v441
    %454 = vmatpush.bf16.msra.mxu0 %v440
    %455 = vmatpush.bf16.msra.mxu0 %v439
    %456 = vmatpush.bf16.msra.mxu0 %v438
    %457 = vmatmul.bf16.gmra.mxu0 %v447
    %v458 = vpop.f32.mrf.mxu0
    %v459 = vadd.f32 %v420, %v458
    %v460 = vpop.f32.mrf.mxu0
    %v461 = vadd.f32 %v420, %v460
    %462 = vdwg.mxu0
    %v463 = vadd.f32 %v459, %v62
    %v464 = vadd.f32 %v461, %v63
    %v465 = vld [vmem:[%s8] sm:$0x1]
    %v466 = vld [vmem:[%s9] sm:$0x1]
    %v467 = vsel %vm109, %v463, 0.0
    %468 = vadd.xlane.f32.xlu0 %v467
    %v469 = vpop.xlane.xlu0 %468
    %v470 = vsel %vm109, %v464, 0.0
    %471 = vadd.xlane.f32.xlu0 %v470
    %v472 = vpop.xlane.xlu0 %471
    %v473 = vrcp.pop 64.0
    %v474 = vmul.f32 64.0, %v473
    %v475 = vsub.f32 1.0, %v474
    %v476 = vmul.f32 %v473, %v475
    %v477 = vadd.f32 %v473, %v476
    %vm478 = vweird.f32 %v473
    %v479 = vsel %vm478, %v473, %v477
    %v480 = vmul.f32 %v469, %v479
    %v481 = vmul.f32 %v472, %v479
    %v482 = vsub.f32 %v463, %v480
    %v483 = vsub.f32 %v464, %v481
    %v484 = vmul.f32 %v482, %v482
    %v485 = vmul.f32 %v483, %v483
    %v486 = vsel %vm109, %v484, 0.0
    %487 = vadd.xlane.f32.xlu0 %v486
    %v488 = vpop.xlane.xlu0 %487
    %v489 = vsel %vm109, %v485, 0.0
    %490 = vadd.xlane.f32.xlu0 %v489
    %v491 = vpop.xlane.xlu0 %490
    %v492 = vmul.f32 %v488, %v479
    %v493 = vmul.f32 %v491, %v479
    %v494 = vadd.f32 %v492, 1e-05
    %v495 = vadd.f32 %v493, 1e-05
    %v496 = vrsqrt.pop %v494
    %v497 = vmul.f32 %v496, %v494
    %v498 = vmul.f32 %v497, %v496
    %v499 = vmul.f32 0.5, %v498
    %v500 = vsub.f32 1.5, %v499
    %v501 = vmul.f32 %v496, %v500
    %vm502 = vweird.f32 %v494
    %vm503 = vweird.f32 %v496
    %vm504 = vmor %vm502, %vm503
    %v505 = vsel %vm504, %v496, %v501
    %v506 = vrsqrt.pop %v495
    %v507 = vmul.f32 %v506, %v495
    %v508 = vmul.f32 %v507, %v506
    %v509 = vmul.f32 0.5, %v508
    %v510 = vsub.f32 1.5, %v509
    %v511 = vmul.f32 %v506, %v510
    %vm512 = vweird.f32 %v495
    %vm513 = vweird.f32 %v506
    %vm514 = vmor %vm512, %vm513
    %v515 = vsel %vm514, %v506, %v511
    %v516 = vmul.f32 %v482, %v505
    %v517 = vmul.f32 %v483, %v515
    %v519 = vperm.slane %v465, 0
    %v521 = vmul.f32 %v516, %v519
    %v522 = vmul.f32 %v517, %v519
    %v524 = vperm.slane %v466, 0
    %v526 = vadd.f32 %v521, %v524
    %v527 = vadd.f32 %v522, %v524
    %v528 = vpack.c.bf16 %v527, %v526
    %v529 = vld [vmem:[%s10] sm:$0xff]
    %v530 = vld [vmem:[%s10 + $0x8] sm:$0xff]
    %v531 = vld [vmem:[%s10 + $0x10] sm:$0xff]
    %v532 = vld [vmem:[%s10 + $0x18] sm:$0xff]
    %v533 = vld [vmem:[%s10 + $0x20] sm:$0xff]
    %v534 = vld [vmem:[%s10 + $0x28] sm:$0xff]
    %v535 = vld [vmem:[%s10 + $0x30] sm:$0xff]
    %v536 = vld [vmem:[%s10 + $0x38] sm:$0xff]
    %v537 = vld [vmem:[%s11] sm:$0x3]
    %v539 = vperm.slane %v537, 0
    %v540 = vperm.slane %v537, 1
    %v551 = vunpack.c.l.b16 %v529
    %v552 = vunpack.c.h.b16 %v529
    %v553 = vunpack.c.l.b16 %v530
    %v554 = vunpack.c.h.b16 %v530
    %v555 = vunpack.c.l.b16 %v531
    %v556 = vunpack.c.h.b16 %v531
    %v557 = vunpack.c.l.b16 %v532
    %v558 = vunpack.c.h.b16 %v532
    %v559 = vunpack.c.l.b16 %v533
    %v560 = vunpack.c.h.b16 %v533
    %v561 = vunpack.c.l.b16 %v534
    %v562 = vunpack.c.h.b16 %v534
    %v563 = vunpack.c.l.b16 %v535
    %v564 = vunpack.c.h.b16 %v535
    %v565 = vunpack.c.l.b16 %v536
    %v566 = vunpack.c.h.b16 %v536
    %v567 = vpack.c.b16 %v553, %v551
    %v568 = vpack.c.b16 %v554, %v552
    %v569 = vpack.c.b16 %v557, %v555
    %v570 = vpack.c.b16 %v558, %v556
    %v571 = vpack.c.b16 %v561, %v559
    %v572 = vpack.c.b16 %v562, %v560
    %v573 = vpack.c.b16 %v565, %v563
    %v574 = vpack.c.b16 %v566, %v564
    %v584 = vsel %vm109, %v528, 0
    %586 = vmatpush.bf16.msra.mxu0 0
    %587 = vmatpush.bf16.msra.mxu0 0
    %588 = vmatpush.bf16.msra.mxu0 0
    %589 = vmatpush.bf16.msra.mxu0 0
    %590 = vmatpush.bf16.msra.mxu0 %v573
    %591 = vmatpush.bf16.msra.mxu0 %v571
    %592 = vmatpush.bf16.msra.mxu0 %v569
    %593 = vmatpush.bf16.msra.mxu0 %v567
    %594 = vmatmul.bf16.gmra.mxu0 %v584
    %v595 = vpop.f32.mrf.mxu0
    %v596 = vadd.f32 %v539, %v595
    %v597 = vpop.f32.mrf.mxu0
    %v598 = vadd.f32 %v539, %v597
    %599 = vdwg.mxu0
    %600 = vmatpush.bf16.msra.mxu0 0
    %601 = vmatpush.bf16.msra.mxu0 0
    %602 = vmatpush.bf16.msra.mxu0 0
    %603 = vmatpush.bf16.msra.mxu0 0
    %604 = vmatpush.bf16.msra.mxu0 %v574
    %605 = vmatpush.bf16.msra.mxu0 %v572
    %606 = vmatpush.bf16.msra.mxu0 %v570
    %607 = vmatpush.bf16.msra.mxu0 %v568
    %608 = vmatmul.bf16.gmra.mxu0 %v584
    %v609 = vpop.f32.mrf.mxu0
    %v610 = vadd.f32 %v540, %v609
    %v611 = vpop.f32.mrf.mxu0
    %v612 = vadd.f32 %v540, %v611
    %613 = vdwg.mxu0
    %v614 = vmax.f32 %v596, 0.0
    %v615 = vmax.f32 %v610, 0.0
    %v616 = vmax.f32 %v598, 0.0
    %v617 = vmax.f32 %v612, 0.0
    %v618 = vpack.c.bf16 %v616, %v614
    %v619 = vpack.c.bf16 %v617, %v615
    %v620 = vld [vmem:[%s12] sm:$0xf]
    %v621 = vld [vmem:[%s12 + $0x4] sm:$0xf]
    %v622 = vld [vmem:[%s12 + $0x8] sm:$0xf]
    %v623 = vld [vmem:[%s12 + $0xc] sm:$0xf]
    %v624 = vld [vmem:[%s12 + $0x10] sm:$0xf]
    %v625 = vld [vmem:[%s12 + $0x14] sm:$0xf]
    %v626 = vld [vmem:[%s12 + $0x18] sm:$0xf]
    %v627 = vld [vmem:[%s12 + $0x1c] sm:$0xf]
    %v628 = vld [vmem:[%s12 + $0x20] sm:$0xf]
    %v629 = vld [vmem:[%s12 + $0x24] sm:$0xf]
    %v630 = vld [vmem:[%s12 + $0x28] sm:$0xf]
    %v631 = vld [vmem:[%s12 + $0x2c] sm:$0xf]
    %v632 = vld [vmem:[%s12 + $0x30] sm:$0xf]
    %v633 = vld [vmem:[%s12 + $0x34] sm:$0xf]
    %v634 = vld [vmem:[%s12 + $0x38] sm:$0xf]
    %v635 = vld [vmem:[%s12 + $0x3c] sm:$0xf]
    %v636 = vld [vmem:[%s12 + $0x40] sm:$0xf]
    %v637 = vld [vmem:[%s12 + $0x44] sm:$0xf]
    %v638 = vld [vmem:[%s12 + $0x48] sm:$0xf]
    %v639 = vld [vmem:[%s12 + $0x4c] sm:$0xf]
    %v640 = vld [vmem:[%s12 + $0x50] sm:$0xf]
    %v641 = vld [vmem:[%s12 + $0x54] sm:$0xf]
    %v642 = vld [vmem:[%s12 + $0x58] sm:$0xf]
    %v643 = vld [vmem:[%s12 + $0x5c] sm:$0xf]
    %v644 = vld [vmem:[%s12 + $0x60] sm:$0xf]
    %v645 = vld [vmem:[%s12 + $0x64] sm:$0xf]
    %v646 = vld [vmem:[%s12 + $0x68] sm:$0xf]
    %v647 = vld [vmem:[%s12 + $0x6c] sm:$0xf]
    %v648 = vld [vmem:[%s12 + $0x70] sm:$0xf]
    %v649 = vld [vmem:[%s12 + $0x74] sm:$0xf]
    %v650 = vld [vmem:[%s12 + $0x78] sm:$0xf]
    %v651 = vld [vmem:[%s12 + $0x7c] sm:$0xf]
    %v652 = vld [vmem:[%s13] sm:$0x1]
    %v654 = vperm.slane %v652, 0
    %v688 = vunpack.c.l.b16 %v620
    %v689 = vunpack.c.l.b16 %v621
    %v690 = vunpack.c.l.b16 %v622
    %v691 = vunpack.c.l.b16 %v623
    %v692 = vunpack.c.l.b16 %v624
    %v693 = vunpack.c.l.b16 %v625
    %v694 = vunpack.c.l.b16 %v626
    %v695 = vunpack.c.l.b16 %v627
    %v696 = vunpack.c.l.b16 %v628
    %v697 = vunpack.c.l.b16 %v629
    %v698 = vunpack.c.l.b16 %v630
    %v699 = vunpack.c.l.b16 %v631
    %v700 = vunpack.c.l.b16 %v632
    %v701 = vunpack.c.l.b16 %v633
    %v702 = vunpack.c.l.b16 %v634
    %v703 = vunpack.c.l.b16 %v635
    %v704 = vunpack.c.l.b16 %v636
    %v705 = vunpack.c.l.b16 %v637
    %v706 = vunpack.c.l.b16 %v638
    %v707 = vunpack.c.l.b16 %v639
    %v708 = vunpack.c.l.b16 %v640
    %v709 = vunpack.c.l.b16 %v641
    %v710 = vunpack.c.l.b16 %v642
    %v711 = vunpack.c.l.b16 %v643
    %v712 = vunpack.c.l.b16 %v644
    %v713 = vunpack.c.l.b16 %v645
    %v714 = vunpack.c.l.b16 %v646
    %v715 = vunpack.c.l.b16 %v647
    %v716 = vunpack.c.l.b16 %v648
    %v717 = vunpack.c.l.b16 %v649
    %v718 = vunpack.c.l.b16 %v650
    %v719 = vunpack.c.l.b16 %v651
    %v720 = vpack.c.b16 %v689, %v688
    %v721 = vpack.c.b16 %v691, %v690
    %v722 = vpack.c.b16 %v693, %v692
    %v723 = vpack.c.b16 %v695, %v694
    %v724 = vpack.c.b16 %v697, %v696
    %v725 = vpack.c.b16 %v699, %v698
    %v726 = vpack.c.b16 %v701, %v700
    %v727 = vpack.c.b16 %v703, %v702
    %v728 = vpack.c.b16 %v705, %v704
    %v729 = vpack.c.b16 %v707, %v706
    %v730 = vpack.c.b16 %v709, %v708
    %v731 = vpack.c.b16 %v711, %v710
    %v732 = vpack.c.b16 %v713, %v712
    %v733 = vpack.c.b16 %v715, %v714
    %v734 = vpack.c.b16 %v717, %v716
    %v735 = vpack.c.b16 %v719, %v718
    %752 = vmatpush.bf16.msra.mxu0 %v727
    %753 = vmatpush.bf16.msra.mxu0 %v726
    %754 = vmatpush.bf16.msra.mxu0 %v725
    %755 = vmatpush.bf16.msra.mxu0 %v724
    %756 = vmatpush.bf16.msra.mxu0 %v723
    %757 = vmatpush.bf16.msra.mxu0 %v722
    %758 = vmatpush.bf16.msra.mxu0 %v721
    %759 = vmatpush.bf16.msra.mxu0 %v720
    %760 = vmatmul.bf16.gmra.mxu0 %v618
    %v761 = vpop.f32.mrf.mxu0
    %v762 = vadd.f32 %v654, %v761
    %v763 = vpop.f32.mrf.mxu0
    %v764 = vadd.f32 %v654, %v763
    %765 = vdwg.mxu0
    %766 = vmatpush.bf16.msra.mxu0 %v735
    %767 = vmatpush.bf16.msra.mxu0 %v734
    %768 = vmatpush.bf16.msra.mxu0 %v733
    %769 = vmatpush.bf16.msra.mxu0 %v732
    %770 = vmatpush.bf16.msra.mxu0 %v731
    %771 = vmatpush.bf16.msra.mxu0 %v730
    %772 = vmatpush.bf16.msra.mxu0 %v729
    %773 = vmatpush.bf16.msra.mxu0 %v728
    %774 = vmatmul.bf16.gmra.mxu0 %v619
    %v775 = vpop.f32.mrf.mxu0
    %v776 = vadd.f32 %v762, %v775
    %v777 = vpop.f32.mrf.mxu0
    %v778 = vadd.f32 %v764, %v777
    %779 = vdwg.mxu0
    %v780 = vld [vmem:[%s14] sm:$0x1]
    %v781 = vld [vmem:[%s15] sm:$0x1]
    %v782 = vsel %vm109, %v776, 0.0
    %783 = vadd.xlane.f32.xlu0 %v782
    %v784 = vpop.xlane.xlu0 %783
    %v785 = vsel %vm109, %v778, 0.0
    %786 = vadd.xlane.f32.xlu0 %v785
    %v787 = vpop.xlane.xlu0 %786
    %v788 = vmul.f32 %v784, %v479
    %v789 = vmul.f32 %v787, %v479
    %v790 = vsub.f32 %v776, %v788
    %v791 = vsub.f32 %v778, %v789
    %v792 = vmul.f32 %v790, %v790
    %v793 = vmul.f32 %v791, %v791
    %v794 = vsel %vm109, %v792, 0.0
    %795 = vadd.xlane.f32.xlu0 %v794
    %v796 = vpop.xlane.xlu0 %795
    %v797 = vsel %vm109, %v793, 0.0
    %798 = vadd.xlane.f32.xlu0 %v797
    %v799 = vpop.xlane.xlu0 %798
    %v800 = vmul.f32 %v796, %v479
    %v801 = vmul.f32 %v799, %v479
    %v802 = vadd.f32 %v800, 1e-05
    %v803 = vadd.f32 %v801, 1e-05
    %v804 = vrsqrt.pop %v802
    %v805 = vmul.f32 %v804, %v802
    %v806 = vmul.f32 %v805, %v804
    %v807 = vmul.f32 0.5, %v806
    %v808 = vsub.f32 1.5, %v807
    %v809 = vmul.f32 %v804, %v808
    %vm810 = vweird.f32 %v802
    %vm811 = vweird.f32 %v804
    %vm812 = vmor %vm810, %vm811
    %v813 = vsel %vm812, %v804, %v809
    %v814 = vrsqrt.pop %v803
    %v815 = vmul.f32 %v814, %v803
    %v816 = vmul.f32 %v815, %v814
    %v817 = vmul.f32 0.5, %v816
    %v818 = vsub.f32 1.5, %v817
    %v819 = vmul.f32 %v814, %v818
    %vm820 = vweird.f32 %v803
    %vm821 = vweird.f32 %v814
    %vm822 = vmor %vm820, %vm821
    %v823 = vsel %vm822, %v814, %v819
    %v824 = vmul.f32 %v790, %v813
    %v825 = vmul.f32 %v791, %v823
    %v827 = vperm.slane %v780, 0
    %v829 = vmul.f32 %v824, %v827
    %v830 = vmul.f32 %v825, %v827
    %v832 = vperm.slane %v781, 0
    %v834 = vadd.f32 %v829, %v832
    %v835 = vadd.f32 %v830, %v832
    %v836 = vadd.f32 %v834, %v776
    %v837 = vadd.f32 %v835, %v778
    %838 = vst.msk [vmem:[#allocation2] sm:$0xff] %vm109, %v836
    %839 = vst.msk [vmem:[#allocation2 + $0x8] sm:$0xff] %vm109, %v837
    // Predicated region
    $region70: #{encoder_block.1} parent=1 // pred_check
      _
    $region71: #{encoder_block.1} parent=1 // pred_check_branch
      %841 = sbr.rel (0) target = $region73
    $region72: #{encoder_block.1} parent=1 // pred_region
      %843 = vsyncadd [#allocation3], 0
      %s844 = sshll.u32 [#allocation2], 4
      %s845 = int_to_ptr.vmem [resolvable:$true] %s844
      %s846 = sshll.u32 %s17, 4
      %s847 = int_to_ptr.hbm [resolvable:$true] %s846
      %852 = dma.vmem_to_hbm [thread:$0]  %s845, 256, %s847, [#allocation3], 128, 128, 8
    $region73: #{encoder_block.1} parent=1 // pred_fallthru
      _
    // Predicated region
    $region74: #{encoder_block.1} parent=1 // pred_check
      _
    $region75: #{encoder_block.1} parent=1 // pred_check_branch
      %854 = sbr.rel (0) target = $region77
    $region76: #{encoder_block.1} parent=1 // pred_region
      %856 = dma.done [#allocation3], 256
    $region77: #{encoder_block.1} parent=1 // pred_fallthru
      _
    %857 = vsyncpa [#allocation3], 1

</llo_original>
